<compile_context>
chip_gen: v5e
topology: v5e:2x2
jax: 0.10.0
libtpu: 0.0.40
codegen_flags: <defaults>
</compile_context>

<pallas_src>
import functools

import jax
import jax.numpy as jnp
from jax import lax
from jax.experimental import pallas as pl
from jax.experimental.pallas import tpu as pltpu


def _round_up(x, m):
    return ((x + m - 1) // m) * m


def _pad2(a, rows, cols):
    r, c = a.shape
    if r == rows and c == cols:
        return a
    return jnp.pad(a, ((0, rows - r), (0, cols - c)))


def _pick_tile(total, unit, cap):
    """Largest multiple of `unit` that divides `total` and is <= cap."""
    best = unit
    t = unit
    while t <= min(total, cap):
        if total % t == 0:
            best = t
        t += unit
    return best


# ---------------------------------------------------------------------------
# Kernels (output dtype is f32 -> accumulate directly into o_ref, no scratch)
# ---------------------------------------------------------------------------

def _acc_epilogue(o_ref, contrib, b_eff, single_k):
    """Write/accumulate `contrib` into o_ref; add bias on the last K step."""
    if single_k:
        o_ref[...] = (contrib + b_eff).astype(o_ref.dtype)
        return

    k = pl.program_id(2)

    @pl.when(k == 0)
    def _():
        o_ref[...] = contrib.astype(o_ref.dtype)

    @pl.when(k > 0)
    def _():
        o_ref[...] += contrib.astype(o_ref.dtype)

    @pl.when(k == pl.num_programs(2) - 1)
    def _():
        o_ref[...] += b_eff.astype(o_ref.dtype)


def _train_kernel_2mm(x_ref, wmu_ref, wsig_ref, ein_ref, bmu_ref, bsig_ref,
                      beps_ref, o_ref, *, single_k):
    """Small-batch form: y = x@W_mu.T + ((x*eps_in)@W_sigma.T)*eps_out + b_eff.

    Moves the O(N*K) noise-reconstruction VPU work onto the MXU (which has
    slack when the M tile is small) and never materializes w_eff in VMEM.
    """
    x_blk = x_ref[...]
    xs = x_blk * ein_ref[...]                                   # (tm, tk)
    dn = (((1,), (1,)), ((), ()))                               # contract last dims
    contrib = lax.dot_general(x_blk, wmu_ref[...], dimension_numbers=dn,
                              preferred_element_type=jnp.float32)
    contrib += lax.dot_general(xs, wsig_ref[...], dimension_numbers=dn,
                               preferred_element_type=jnp.float32) * beps_ref[...]
    b_eff = bmu_ref[...] + bsig_ref[...] * beps_ref[...]        # (1, tn), f32
    _acc_epilogue(o_ref, contrib, b_eff, single_k)


def _train_kernel_fused(x_ref, wmu_ref, wsig_ref, ein_ref, eout_ref,
                        bmu_ref, bsig_ref, beps_ref, o_ref, *, single_k):
    """Large-batch form: reconstruct W_eff per tile (one matmul per K step)."""
    # Rank-1 factorized noise rebuilt on the VPU (in the streaming dtype, so
    # bf16 on v6e/v7x when bf16_matmul is enabled).
    w_eff = wmu_ref[...] + wsig_ref[...] * (eout_ref[...] * ein_ref[...])
    contrib = lax.dot_general(x_ref[...], w_eff,
                              dimension_numbers=(((1,), (1,)), ((), ())),
                              preferred_element_type=jnp.float32)
    b_eff = bmu_ref[...] + bsig_ref[...] * beps_ref[...]
    _acc_epilogue(o_ref, contrib, b_eff, single_k)


def _eval_kernel(x_ref, w_ref, b_ref, o_ref, *, single_k):
    """Eval path: y = x @ W_mu.T + b_mu  (no noise buffers streamed at all)."""
    contrib = lax.dot_general(x_ref[...], w_ref[...],
                              dimension_numbers=(((1,), (1,)), ((), ())),
                              preferred_element_type=jnp.float32)
    _acc_epilogue(o_ref, contrib, b_ref[...], single_k)


# ---------------------------------------------------------------------------
# Wrapper
# ---------------------------------------------------------------------------

@functools.partial(jax.jit,
                   static_argnames=("training", "bf16_matmul",
                                    "tile_budget_bytes"))
def noisy_linear_forward(x, params, training=True, bf16_matmul=False,
                         tile_budget_bytes=14 * 1024 * 1024):
    """x: [B, in_features] -> [B, out_features].

    bf16_matmul=True is the recommended setting on v6e/v7x (bf16 weight
    streaming + bf16 MXU, f32 accumulation).  On v5e the bf16 VALU is missing
    so elementwise noise math is promoted, but the DMA saving still wins.
    """
    M, K = x.shape
    N = params["weight_mu"].shape[0]
    orig_dtype = x.dtype
    f32 = jnp.float32
    cdt = jnp.bfloat16 if bf16_matmul else f32
    nbytes = 2 if bf16_matmul else 4

    # Minimal lane/sublane padding (no per-tile padding tax).
    Mp = _round_up(M, 8)
    Kp = _round_up(K, 128)
    Np = _round_up(N, 128)

    # ---- tile selection: divisors of the padded extents, VMEM-budgeted ----
    tm = _pick_tile(Mp, 8, 256)
    n_w = 2 if training else 1          # weight matrices streamed per K step
    tk, tn = 128, 128
    for tk_cap, tn_cap in ((4096, 512), (2048, 512), (1024, 512), (1024, 256),
                           (512, 256), (512, 128), (256, 128), (128, 128)):
        tk_c = _pick_tile(Kp, 128, tk_cap)
        tn_c = _pick_tile(Np, 128, tn_cap)
        footprint = (2 * (tm * tk_c * nbytes + n_w * tn_c * tk_c * nbytes)
                     + 2 * tm * tn_c * 4
                     + 2 * (tk_c + 4 * tn_c) * 4)
        if footprint <= tile_budget_bytes:
            tk, tn = tk_c, tn_c
            break

    # v7x has two TensorCores: guarantee >= 2 parallel tiles when possible.
    if (Mp // tm) * (Np // tn) < 2:
        if Np % 256 == 0 and tn == Np:
            tn = Np // 2
        elif Mp % 16 == 0 and tm == Mp:
            tm = Mp // 2

    grid = (Mp // tm, Np // tn, Kp // tk)
    gm, gn, gk = grid
    single_k = gk == 1

    # ---- pad (zero padding is exact) and cast the streamed operands ----
    xp = _pad2(x, Mp, Kp).astype(cdt)
    wmu = _pad2(params["weight_mu"], Np, Kp).astype(cdt)
    bmu = _pad2(params["bias_mu"].reshape(1, N).astype(f32), 1, Np)

    compiler_params = pltpu.CompilerParams(
        dimension_semantics=("parallel", "parallel", "arbitrary"),
        vmem_limit_bytes=32 * 1024 * 1024,
    )

    x_spec = pl.BlockSpec((tm, tk), lambda i, j, k: (i, k))
    w_spec = pl.BlockSpec((tn, tk), lambda i, j, k: (j, k))
    row_spec = pl.BlockSpec((1, tk), lambda i, j, k: (0, k))     # eps_in
    col_spec = pl.BlockSpec((tn, 1), lambda i, j, k: (j, 0))     # eps_out (fused)
    b_spec = pl.BlockSpec((1, tn), lambda i, j, k: (0, j))
    o_spec = pl.BlockSpec((tm, tn), lambda i, j, k: (i, j))
    out_shape = jax.ShapeDtypeStruct((Mp, Np), f32)

    if training:
        wsig = _pad2(params["weight_sigma"], Np, Kp).astype(cdt)
        ein = _pad2(params["eps_in"].reshape(1, K), 1, Kp).astype(cdt)
        bsig = _pad2(params["bias_sigma"].reshape(1, N).astype(f32), 1, Np)
        beps = _pad2(params["eps_out"].reshape(1, N).astype(f32), 1, Np)

        use_two_matmul = Mp <= 128      # MXU has slack at small batch
        n_mm = 2 if use_two_matmul else 1
        cost = pl.CostEstimate(
            flops=2 * Mp * Kp * Np * n_mm,
            transcendentals=0,
            bytes_accessed=(gm * 2 * Np * Kp * nbytes + gn * Mp * Kp * nbytes
                            + Mp * Np * 4 + (Kp + 4 * Np) * 4))

        if use_two_matmul:
            kernel = functools.partial(_train_kernel_2mm, single_k=single_k)
            in_specs = [x_spec, w_spec, w_spec, row_spec, b_spec, b_spec, b_spec]
            args = (xp, wmu, wsig, ein, bmu, bsig, beps)
        else:
            eout = _pad2(params["eps_out"].reshape(N, 1), Np, 1).astype(cdt)
            kernel = functools.partial(_train_kernel_fused, single_k=single_k)
            in_specs = [x_spec, w_spec, w_spec, row_spec, col_spec,
                        b_spec, b_spec, b_spec]
            args = (xp, wmu, wsig, ein, eout, bmu, bsig, beps)
    else:
        cost = pl.CostEstimate(
            flops=2 * Mp * Kp * Np,
            transcendentals=0,
            bytes_accessed=(gm * Np * Kp * nbytes + gn * Mp * Kp * nbytes
                            + Mp * Np * 4 + Np * 4))
        kernel = functools.partial(_eval_kernel, single_k=single_k)
        in_specs = [x_spec, w_spec, b_spec]
        args = (xp, wmu, bmu)

    y = pl.pallas_call(
        kernel,
        out_shape=out_shape,
        grid_spec=pltpu.PrefetchScalarGridSpec(
            num_scalar_prefetch=0,
            grid=grid,
            in_specs=in_specs,
            out_specs=o_spec),
        compiler_params=compiler_params,
        cost_estimate=cost,
    )(*args)

    return y[:M, :N].astype(orig_dtype)


# ---------------------------------------------------------------------------
# Parameter / noise init (matches NoisyLinear.reset_parameters / reset_noise,
# keeping the factorized noise vectors instead of the [N, K] outer product).
# ---------------------------------------------------------------------------

def _scale_noise(key, size):
    """Factorized gaussian noise: sign(x) * sqrt(|x|), x ~ N(0, 1)."""
    v = jax.random.normal(key, (size,), dtype=jnp.float32)
    return jnp.sign(v) * jnp.sqrt(jnp.abs(v))


def init_noisy_linear(key, in_features, out_features, std_init=0.5):
    k_wmu, k_bmu, k_ein, k_eout = jax.random.split(key, 4)
    mu_range = 1.0 / jnp.sqrt(jnp.float32(in_features))

    weight_mu = jax.random.uniform(
        k_wmu, (out_features, in_features), jnp.float32, -mu_range, mu_range)
    weight_sigma = jnp.full((out_features, in_features),
                            std_init / jnp.sqrt(jnp.float32(in_features)),
                            dtype=jnp.float32)
    bias_mu = jax.random.uniform(
        k_bmu, (out_features,), jnp.float32, -mu_range, mu_range)
    bias_sigma = jnp.full((out_features,),
                          std_init / jnp.sqrt(jnp.float32(out_features)),
                          dtype=jnp.float32)

    # weight_epsilon == outer(eps_out, eps_in); bias_epsilon == eps_out.
    return {
        "weight_mu": weight_mu,
        "weight_sigma": weight_sigma,
        "bias_mu": bias_mu,
        "bias_sigma": bias_sigma,
        "eps_in": _scale_noise(k_ein, in_features),
        "eps_out": _scale_noise(k_eout, out_features),
    }


def noisy_linear_ref(x, params, training=True):
    """Pure-JAX reference (reconstructs the torch buffers exactly)."""
    if training:
        w_eps = jnp.outer(params["eps_out"], params["eps_in"])
        w = params["weight_mu"] + params["weight_sigma"] * w_eps
        b = params["bias_mu"] + params["bias_sigma"] * params["eps_out"]
    else:
        w = params["weight_mu"]
        b = params["bias_mu"]
    return jnp.einsum("mk,nk->mn", x, w,
                      precision=jax.lax.Precision.HIGHEST) + b


if __name__ == "__main__":
    key = jax.random.PRNGKey(0)
    k_p1, k_p2, k_x1, k_x2, k_x3 = jax.random.split(key, 5)

    # --- small problem: two-matmul training path, single K step -------------
    batch, in_f, out_f = 4, 32, 16
    params = init_noisy_linear(k_p1, in_f, out_f, std_init=0.5)
    x = jax.random.normal(k_x1, (batch, in_f), dtype=jnp.float32)

    y_train = noisy_linear_forward(x, params, training=True)
    y_eval = noisy_linear_forward(x, params, training=False)
    jax.block_until_ready((y_train, y_eval))
    assert y_train.shape == (batch, out_f) and y_eval.shape == (batch, out_f)
    assert jnp.allclose(y_train, noisy_linear_ref(x, params, True),
                        atol=1e-4, rtol=1e-4)
    assert jnp.allclose(y_eval, noisy_linear_ref(x, params, False),
                        atol=1e-4, rtol=1e-4)

    # bf16 weight-streaming / MXU fast path (recommended on v6e/v7x).
    y_bf16 = noisy_linear_forward(x, params, training=True, bf16_matmul=True)
    jax.block_until_ready(y_bf16)
    assert jnp.allclose(y_bf16, noisy_linear_ref(x, params, True),
                        atol=5e-2, rtol=5e-2)

    # --- medium problem: fused kernel + the >=2-parallel-tile (v7x) split ---
    batch2, in_f2, out_f2 = 192, 640, 384
    params2 = init_noisy_linear(k_p2, in_f2, out_f2, std_init=0.5)
    x2 = jax.random.normal(k_x2, (batch2, in_f2), dtype=jnp.float32)
    y2 = noisy_linear_forward(x2, params2, training=True)
    y2e = noisy_linear_forward(x2, params2, training=False)
    jax.block_until_ready((y2, y2e))
    assert jnp.allclose(y2, noisy_linear_ref(x2, params2, True),
                        atol=2e-3, rtol=2e-3)
    assert jnp.allclose(y2e, noisy_linear_ref(x2, params2, False),
                        atol=2e-3, rtol=2e-3)

    # --- tiny VMEM budget forces a multi-step K reduction (both kernels) ----
    x3 = jax.random.normal(k_x3, (16, in_f2), dtype=jnp.float32)
    y3 = noisy_linear_forward(x3, params2, training=True,
                              tile_budget_bytes=1 * 1024 * 1024)
    y4 = noisy_linear_forward(x2, params2, training=True,
                              tile_budget_bytes=1 * 1024 * 1024)
    jax.block_until_ready((y3, y4))
    assert jnp.allclose(y3, noisy_linear_ref(x3, params2, True),
                        atol=2e-3, rtol=2e-3)
    assert jnp.allclose(y4, noisy_linear_ref(x2, params2, True),
                        atol=2e-3, rtol=2e-3)

    print("KERNEL_OK")
</pallas_src>

<mosaic_0001>
module attributes {stable_mosaic.version = 11 : i64} {
  func.func @_train_kernel_2mm(%arg0: i32, %arg1: i32, %arg2: i32, %arg3: memref<8x128xf32, #tpu.memory_space<vmem>>, %arg4: memref<128x128xf32, #tpu.memory_space<vmem>>, %arg5: memref<128x128xf32, #tpu.memory_space<vmem>>, %arg6: memref<1x128xf32, #tpu.memory_space<vmem>>, %arg7: memref<1x128xf32, #tpu.memory_space<vmem>>, %arg8: memref<1x128xf32, #tpu.memory_space<vmem>>, %arg9: memref<1x128xf32, #tpu.memory_space<vmem>>, %arg10: memref<8x128xf32, #tpu.memory_space<vmem>>) attributes {dimension_semantics = [#tpu.dimension_semantics<parallel>, #tpu.dimension_semantics<parallel>, #tpu.dimension_semantics<arbitrary>], iteration_bounds = array<i64: 1, 1, 1>, scalar_prefetch = 0 : i64, scratch_operands = 0 : i64, tpu.core_type = #tpu.core_type<tc>, window_params = [{transform_indices = @transform_0, window_bounds = array<i64: 8, 128>}, {transform_indices = @transform_1, window_bounds = array<i64: 128, 128>}, {transform_indices = @transform_2, window_bounds = array<i64: 128, 128>}, {transform_indices = @transform_3, window_bounds = array<i64: 1, 128>}, {transform_indices = @transform_4, window_bounds = array<i64: 1, 128>}, {transform_indices = @transform_5, window_bounds = array<i64: 1, 128>}, {transform_indices = @transform_6, window_bounds = array<i64: 1, 128>}, {transform_indices = @transform_7, window_bounds = array<i64: 8, 128>}]} {
    %c0 = arith.constant 0 : index
    %c0_0 = arith.constant 0 : index
    %0 = vector.load %arg3[%c0, %c0_0] : memref<8x128xf32, #tpu.memory_space<vmem>>, vector<8x128xf32>
    %c0_1 = arith.constant 0 : index
    %c0_2 = arith.constant 0 : index
    %1 = vector.load %arg6[%c0_1, %c0_2] : memref<1x128xf32, #tpu.memory_space<vmem>>, vector<1x128xf32>
    %2 = vector.broadcast %1 : vector<1x128xf32> to vector<8x128xf32>
    %3 = arith.mulf %0, %2 : vector<8x128xf32>
    %c0_3 = arith.constant 0 : index
    %c0_4 = arith.constant 0 : index
    %4 = vector.load %arg4[%c0_3, %c0_4] : memref<128x128xf32, #tpu.memory_space<vmem>>, vector<128x128xf32>
    %cst = arith.constant dense<0.000000e+00> : vector<8x128xf32>
    %5 = tpu.matmul %0, %4, %cst {dimension_numbers = #tpu.dot_dimension_numbers<[1], [1], [0], [0], [0, 0, 1, 0], [], []>} : vector<8x128xf32>, vector<128x128xf32>, vector<8x128xf32> -> vector<8x128xf32>
    %c0_5 = arith.constant 0 : index
    %c0_6 = arith.constant 0 : index
    %6 = vector.load %arg5[%c0_5, %c0_6] : memref<128x128xf32, #tpu.memory_space<vmem>>, vector<128x128xf32>
    %cst_7 = arith.constant dense<0.000000e+00> : vector<8x128xf32>
    %7 = tpu.matmul %3, %6, %cst_7 {dimension_numbers = #tpu.dot_dimension_numbers<[1], [1], [0], [0], [0, 0, 1, 0], [], []>} : vector<8x128xf32>, vector<128x128xf32>, vector<8x128xf32> -> vector<8x128xf32>
    %c0_8 = arith.constant 0 : index
    %c0_9 = arith.constant 0 : index
    %8 = vector.load %arg9[%c0_8, %c0_9] : memref<1x128xf32, #tpu.memory_space<vmem>>, vector<1x128xf32>
    %9 = vector.broadcast %8 : vector<1x128xf32> to vector<8x128xf32>
    %10 = arith.mulf %7, %9 : vector<8x128xf32>
    %11 = arith.addf %5, %10 : vector<8x128xf32>
    %c0_10 = arith.constant 0 : index
    %c0_11 = arith.constant 0 : index
    %12 = vector.load %arg7[%c0_10, %c0_11] : memref<1x128xf32, #tpu.memory_space<vmem>>, vector<1x128xf32>
    %c0_12 = arith.constant 0 : index
    %c0_13 = arith.constant 0 : index
    %13 = vector.load %arg8[%c0_12, %c0_13] : memref<1x128xf32, #tpu.memory_space<vmem>>, vector<1x128xf32>
    %c0_14 = arith.constant 0 : index
    %c0_15 = arith.constant 0 : index
    %14 = vector.load %arg9[%c0_14, %c0_15] : memref<1x128xf32, #tpu.memory_space<vmem>>, vector<1x128xf32>
    %15 = arith.mulf %13, %14 : vector<1x128xf32>
    %16 = arith.addf %12, %15 : vector<1x128xf32>
    %17 = vector.broadcast %16 : vector<1x128xf32> to vector<8x128xf32>
    %18 = arith.addf %11, %17 : vector<8x128xf32>
    %c0_16 = arith.constant 0 : index
    %c0_17 = arith.constant 0 : index
    %19 = vector.load %arg10[%c0_16, %c0_17] : memref<8x128xf32, #tpu.memory_space<vmem>>, vector<8x128xf32>
    tpu.vector_store %arg10[%c0_16, %c0_17], %18 {strides = array<i32>} : memref<8x128xf32, #tpu.memory_space<vmem>>, vector<8x128xf32>,
    return
  }
  func.func @transform_0(%arg0: i32, %arg1: i32, %arg2: i32) -> (i32, i32) {
    %c0_i32 = arith.constant 0 : i32
    return %arg0, %arg2 : i32, i32
  }
  func.func @transform_1(%arg0: i32, %arg1: i32, %arg2: i32) -> (i32, i32) {
    %c0_i32 = arith.constant 0 : i32
    return %arg1, %arg2 : i32, i32
  }
  func.func @transform_2(%arg0: i32, %arg1: i32, %arg2: i32) -> (i32, i32) {
    %c0_i32 = arith.constant 0 : i32
    return %arg1, %arg2 : i32, i32
  }
  func.func @transform_3(%arg0: i32, %arg1: i32, %arg2: i32) -> (i32, i32) {
    %c0_i32 = arith.constant 0 : i32
    %c0_i32_0 = arith.constant 0 : i32
    return %c0_i32, %arg2 : i32, i32
  }
  func.func @transform_4(%arg0: i32, %arg1: i32, %arg2: i32) -> (i32, i32) {
    %c0_i32 = arith.constant 0 : i32
    %c0_i32_0 = arith.constant 0 : i32
    return %c0_i32, %arg1 : i32, i32
  }
  func.func @transform_5(%arg0: i32, %arg1: i32, %arg2: i32) -> (i32, i32) {
    %c0_i32 = arith.constant 0 : i32
    %c0_i32_0 = arith.constant 0 : i32
    return %c0_i32, %arg1 : i32, i32
  }
  func.func @transform_6(%arg0: i32, %arg1: i32, %arg2: i32) -> (i32, i32) {
    %c0_i32 = arith.constant 0 : i32
    %c0_i32_0 = arith.constant 0 : i32
    return %c0_i32, %arg1 : i32, i32
  }
  func.func @transform_7(%arg0: i32, %arg1: i32, %arg2: i32) -> (i32, i32) {
    %c0_i32 = arith.constant 0 : i32
    return %arg0, %arg1 : i32, i32
  }
}

</mosaic_0001>

<llo_original>
// kernel: noisy_linear_forward.1
$region0: #{noisy_linear_forward.1}
  #allocation0 [shape = 'u32[]', space=smem, size = 0x4, offset = 0x4, fixed_abs, tag = 'smem constant byte address 0x4 - core index']
  #allocation1 [shape = 'u32[72,128]{1,0:T(1,128)}', space=vmem, size = 0x9000, scoped, tag = 'internal scratch']
  %s0 = inlined_call_operand.vmem [shape: f32[8,128], index: 0, kind: input, shape index: {}]
  %s1 = inlined_call_operand.vmem [shape: f32[128,128], index: 1, kind: input, shape index: {}]
  %s2 = inlined_call_operand.vmem [shape: f32[128,128], index: 2, kind: input, shape index: {}]
  %s3 = inlined_call_operand.vmem [shape: f32[1,128], index: 3, kind: input, shape index: {}]
  %s4 = inlined_call_operand.vmem [shape: f32[1,128], index: 4, kind: input, shape index: {}]
  %s5 = inlined_call_operand.vmem [shape: f32[1,128], index: 5, kind: input, shape index: {}]
  %s6 = inlined_call_operand.vmem [shape: f32[1,128], index: 6, kind: input, shape index: {}]
  %s7 = inlined_call_operand.vmem [shape: f32[8,128], index: 7, kind: output, shape index: {}]
  %s8 = sld [smem:[#allocation0]]
  $region38: #{noisy_linear_forward.1} parent=0
    _
  %s10 = ssub.s32 1, %s8
  %s11 = scalar_select 0, %s10, %s8
  // Predicated region
  $region2: #{noisy_linear_forward.1} parent=0 // pred_check
    _
  $region3: #{noisy_linear_forward.1} parent=0 // pred_check_branch
    %13 = sbr.rel (0) target = $region5
  $region4: #{noisy_linear_forward.1} parent=0 // pred_region
    _
  $region5: #{noisy_linear_forward.1} parent=0 // pred_fallthru
    _
  // Predicated region
  $region6: #{noisy_linear_forward.1} parent=0 // pred_check
    _
  $region7: #{noisy_linear_forward.1} parent=0 // pred_check_branch
    %15 = sbr.rel (0) target = $region9
  $region8: #{noisy_linear_forward.1} parent=0 // pred_region
    _
  $region9: #{noisy_linear_forward.1} parent=0 // pred_fallthru
    _
  // Predicated region
  $region10: #{noisy_linear_forward.1} parent=0 // pred_check
    _
  $region11: #{noisy_linear_forward.1} parent=0 // pred_check_branch
    %17 = sbr.rel (0) target = $region13
  $region12: #{noisy_linear_forward.1} parent=0 // pred_region
    _
  $region13: #{noisy_linear_forward.1} parent=0 // pred_fallthru
    _
  // Predicated region
  $region14: #{noisy_linear_forward.1} parent=0 // pred_check
    _
  $region15: #{noisy_linear_forward.1} parent=0 // pred_check_branch
    %19 = sbr.rel (0) target = $region17
  $region16: #{noisy_linear_forward.1} parent=0 // pred_region
    _
  $region17: #{noisy_linear_forward.1} parent=0 // pred_fallthru
    _
  // Predicated region
  $region18: #{noisy_linear_forward.1} parent=0 // pred_check
    _
  $region19: #{noisy_linear_forward.1} parent=0 // pred_check_branch
    %21 = sbr.rel (0) target = $region21
  $region20: #{noisy_linear_forward.1} parent=0 // pred_region
    _
  $region21: #{noisy_linear_forward.1} parent=0 // pred_fallthru
    _
  // Predicated region
  $region22: #{noisy_linear_forward.1} parent=0 // pred_check
    _
  $region23: #{noisy_linear_forward.1} parent=0 // pred_check_branch
    %23 = sbr.rel (0) target = $region25
  $region24: #{noisy_linear_forward.1} parent=0 // pred_region
    _
  $region25: #{noisy_linear_forward.1} parent=0 // pred_fallthru
    _
  // Predicated region
  $region26: #{noisy_linear_forward.1} parent=0 // pred_check
    _
  $region27: #{noisy_linear_forward.1} parent=0 // pred_check_branch
    %25 = sbr.rel (0) target = $region29
  $region28: #{noisy_linear_forward.1} parent=0 // pred_region
    _
  $region29: #{noisy_linear_forward.1} parent=0 // pred_fallthru
    _
  %v26 = vld [vmem:[%s0] sm:$0xff]
  %v27 = vld [vmem:[%s3] sm:$0x1]
  %v29 = vperm.slane %v27, 0
  %v31 = vmul.f32 %v26, %v29
  %v32 = vld [vmem:[%s1] sm:$0xff]
  %v33 = vld [vmem:[%s1 + $0x8] sm:$0xff]
  %v34 = vld [vmem:[%s1 + $0x10] sm:$0xff]
  %v35 = vld [vmem:[%s1 + $0x18] sm:$0xff]
  %v36 = vld [vmem:[%s1 + $0x20] sm:$0xff]
  %v37 = vld [vmem:[%s1 + $0x28] sm:$0xff]
  %v38 = vld [vmem:[%s1 + $0x30] sm:$0xff]
  %v39 = vld [vmem:[%s1 + $0x38] sm:$0xff]
  %v40 = vld [vmem:[%s1 + $0x40] sm:$0xff]
  %v41 = vld [vmem:[%s1 + $0x48] sm:$0xff]
  %v42 = vld [vmem:[%s1 + $0x50] sm:$0xff]
  %v43 = vld [vmem:[%s1 + $0x58] sm:$0xff]
  %v44 = vld [vmem:[%s1 + $0x60] sm:$0xff]
  %v45 = vld [vmem:[%s1 + $0x68] sm:$0xff]
  %v46 = vld [vmem:[%s1 + $0x70] sm:$0xff]
  %v47 = vld [vmem:[%s1 + $0x78] sm:$0xff]
  %v48 = vld [vmem:[%s2] sm:$0xff]
  %v49 = vld [vmem:[%s2 + $0x8] sm:$0xff]
  %v50 = vld [vmem:[%s2 + $0x10] sm:$0xff]
  %v51 = vld [vmem:[%s2 + $0x18] sm:$0xff]
  %v52 = vld [vmem:[%s2 + $0x20] sm:$0xff]
  %v53 = vld [vmem:[%s2 + $0x28] sm:$0xff]
  %v54 = vld [vmem:[%s2 + $0x30] sm:$0xff]
  %v55 = vld [vmem:[%s2 + $0x38] sm:$0xff]
  %v56 = vld [vmem:[%s2 + $0x40] sm:$0xff]
  %v57 = vld [vmem:[%s2 + $0x48] sm:$0xff]
  %v58 = vld [vmem:[%s2 + $0x50] sm:$0xff]
  %v59 = vld [vmem:[%s2 + $0x58] sm:$0xff]
  %v60 = vld [vmem:[%s2 + $0x60] sm:$0xff]
  %v61 = vld [vmem:[%s2 + $0x68] sm:$0xff]
  %v62 = vld [vmem:[%s2 + $0x70] sm:$0xff]
  %v63 = vld [vmem:[%s2 + $0x78] sm:$0xff]
  %64 = vmatpush.xpose.msra.mxu0 %v63
  %65 = vmatpush.xpose.msra.mxu0 %v62
  %66 = vmatpush.xpose.msra.mxu0 %v61
  %67 = vmatpush.xpose.msra.mxu0 %v60
  %68 = vmatpush.xpose.msra.mxu0 %v59
  %69 = vmatpush.xpose.msra.mxu0 %v58
  %70 = vmatpush.xpose.msra.mxu0 %v57
  %71 = vmatpush.xpose.msra.mxu0 %v56
  %72 = vmatpush.xpose.msra.mxu0 %v55
  %73 = vmatpush.xpose.msra.mxu0 %v54
  %74 = vmatpush.xpose.msra.mxu0 %v53
  %75 = vmatpush.xpose.msra.mxu0 %v52
  %76 = vmatpush.xpose.msra.mxu0 %v51
  %77 = vmatpush.xpose.msra.mxu0 %v50
  %78 = vmatpush.xpose.msra.mxu0 %v49
  %79 = vmatpush.xpose.msra.mxu0 %v48
  %80 = vmatmul.f32.gmra.mxu0 %v31
  %v81 = vpop.f32.mrf.mxu0
  %v82 = vadd.f32 0.0, %v81
  %83 = vdwg.mxu0
  %v84 = vld [vmem:[%s6] sm:$0x1]
  %v86 = vperm.slane %v84, 0
  %v88 = vmul.f32 %v82, %v86
  %89 = vmatpush.xpose.msra.mxu0 %v47
  %90 = vmatpush.xpose.msra.mxu0 %v46
  %91 = vmatpush.xpose.msra.mxu0 %v45
  %92 = vmatpush.xpose.msra.mxu0 %v44
  %93 = vmatpush.xpose.msra.mxu0 %v43
  %94 = vmatpush.xpose.msra.mxu0 %v42
  %95 = vmatpush.xpose.msra.mxu0 %v41
  %96 = vmatpush.xpose.msra.mxu0 %v40
  %97 = vmatpush.xpose.msra.mxu0 %v39
  %98 = vmatpush.xpose.msra.mxu0 %v38
  %99 = vmatpush.xpose.msra.mxu0 %v37
  %100 = vmatpush.xpose.msra.mxu0 %v36
  %101 = vmatpush.xpose.msra.mxu0 %v35
  %102 = vmatpush.xpose.msra.mxu0 %v34
  %103 = vmatpush.xpose.msra.mxu0 %v33
  %104 = vmatpush.xpose.msra.mxu0 %v32
  %105 = vmatmul.f32.gmra.mxu0 %v26
  %v106 = vpop.f32.mrf.mxu0
  %v107 = vadd.f32 %v88, %v106
  %108 = vdwg.mxu0
  %v109 = vld [vmem:[%s4] sm:$0x1]
  %v110 = vld [vmem:[%s5] sm:$0x1]
  %v111 = vmul.f32 %v110, %v84
  %v112 = vadd.f32 %v109, %v111
  %v114 = vperm.slane %v112, 0
  %v116 = vadd.f32 %v107, %v114
  %117 = vst [vmem:[%s7] sm:$0xff] %v116
  // Predicated region
  $region30: #{noisy_linear_forward.1} parent=0 // pred_check
    _
  $region31: #{noisy_linear_forward.1} parent=0 // pred_check_branch
    %119 = sbr.rel (0) target = $region33
  $region32: #{noisy_linear_forward.1} parent=0 // pred_region
    _
  $region33: #{noisy_linear_forward.1} parent=0 // pred_fallthru
    _
  // Predicated region
  $region34: #{noisy_linear_forward.1} parent=0 // pred_check
    _
  $region35: #{noisy_linear_forward.1} parent=0 // pred_check_branch
    %121 = sbr.rel (0) target = $region37
  $region36: #{noisy_linear_forward.1} parent=0 // pred_region
    _
  $region37: #{noisy_linear_forward.1} parent=0 // pred_fallthru
    _

</llo_original>
